<compile_context>
chip_gen: v6e
topology: v6e:2x2x1
jax: 0.10.0
libtpu: 0.0.40
codegen_flags: <defaults>
</compile_context>

<pallas_src>
import jax
import jax.numpy as jnp
from jax import lax
from jax.experimental import pallas as pl
from jax.experimental.pallas import tpu as pltpu


def _fused_linear_l2norm_kernel(x_ref, w_ref, b_ref, o_ref):
    # Linear: y = x @ W_t + b   (MXU matmul, fp32 accumulate)
    y = jnp.dot(x_ref[...], w_ref[...], preferred_element_type=jnp.float32)
    y = y + b_ref[...]                              # (bm, N) + (1, N) broadcast
    # F.normalize(p=2, dim=1, eps=1e-12): y / max(||y||, 1e-12)
    #   == y * rsqrt(max(sum(y*y), 1e-24)); rsqrt runs on the EUP (free slot).
    sq = jnp.sum(y * y, axis=-1, keepdims=True)
    inv = lax.rsqrt(jnp.maximum(sq, 1e-24))
    o_ref[...] = (y * inv).astype(o_ref.dtype)


def _round_up(v, m):
    return ((v + m - 1) // m) * m


def query_attention_fusion_forward(x, w_t, b, *, block_m=None):
    """x: [B, K] f32, w_t: [K, N] f32 (= fc0.weight.T), b: [N] f32 -> [B, N] f32."""
    B, K = x.shape
    K2, N = w_t.shape
    assert K == K2, "weight/input feature mismatch"
    b2d = b.reshape(1, N)

    # --- Row tile. Kernel is HBM/step-overhead bound: use big tiles, never pad B.
    if block_m is None:
        if B <= 1024:
            block_m = B                      # single grid step, full-extent block
        else:
            # ~2-4k rows per step; at least 2 steps so both v7x TCs get work.
            block_m = min(4096, _round_up(pl.cdiv(B, 2), 8))
    if block_m != B:
        # Block second-to-last dim must be a multiple of 8 (or equal the full dim).
        block_m = max(8, (min(block_m, B) // 8) * 8)
    grid = (pl.cdiv(B, block_m),)            # last block may be partial -> masked

    # --- VMEM budget (generation aware): 2x-buffered x/out tiles + resident w/bias.
    itemsize = 4
    tile_bytes = (2 * block_m * K + 2 * block_m * N + 2 * K * N + 2 * N) * itemsize
    try:
        vmem_cap = pltpu.get_tpu_info().vmem_capacity_bytes
    except Exception:
        vmem_cap = 64 << 20                  # v7x per-TC capacity (most restrictive)
    vmem_limit = int(min(max(2 * tile_bytes, 4 << 20), int(0.75 * vmem_cap)))

    cost = pl.CostEstimate(
        flops=2 * B * K * N,
        transcendentals=B,                   # one rsqrt per row
        bytes_accessed=(B * K + K * N + N + B * N) * itemsize,
    )

    return pl.pallas_call(
        _fused_linear_l2norm_kernel,
        out_shape=jax.ShapeDtypeStruct((B, N), jnp.float32),
        grid_spec=pltpu.PrefetchScalarGridSpec(
            num_scalar_prefetch=0,
            grid=grid,
            in_specs=[
                pl.BlockSpec((block_m, K), lambda i: (i, 0)),   # x row tile
                pl.BlockSpec((K, N), lambda i: (0, 0)),         # full weight, resident
                pl.BlockSpec((1, N), lambda i: (0, 0)),         # bias row, resident
            ],
            out_specs=pl.BlockSpec((block_m, N), lambda i: (i, 0)),
        ),
        compiler_params=pltpu.CompilerParams(
            dimension_semantics=("parallel",),   # independent row tiles (v7x megacore)
            vmem_limit_bytes=vmem_limit,
        ),
        cost_estimate=cost,
    )(x, w_t, b2d)


def reference_forward(x, w_t, b):
    y = x @ w_t + b
    norm = jnp.maximum(jnp.linalg.norm(y, axis=1, keepdims=True), 1e-12)
    return y / norm


if __name__ == "__main__":
    # Small shapes consistent with the module: emb_list[0] is [batch, input_dims[0]].
    batch, in_dim, emb_dim = 8, 32, 32

    key = jax.random.PRNGKey(0)
    kx, kw, kb = jax.random.split(key, 3)

    x = jax.random.normal(kx, (batch, in_dim), dtype=jnp.float32)

    # Deterministic "fc0" parameters (nn.Linear(in_dim, emb_dim)); stored pre-transposed.
    bound = 1.0 / jnp.sqrt(jnp.float32(in_dim))
    w = jax.random.uniform(kw, (emb_dim, in_dim), minval=-bound, maxval=bound,
                           dtype=jnp.float32)
    b = jax.random.uniform(kb, (emb_dim,), minval=-bound, maxval=bound,
                           dtype=jnp.float32)
    w_t = w.T  # [in_dim, emb_dim]

    out = query_attention_fusion_forward(x, w_t, b)
    out = jax.block_until_ready(out)

    ref = reference_forward(x, w_t, b)
    assert out.shape == (batch, emb_dim)
    assert jnp.allclose(out, ref, atol=1e-5, rtol=1e-5), "mismatch vs reference"

    print("KERNEL_OK")
</pallas_src>

<mosaic_0001>
module attributes {stable_mosaic.version = 11 : i64} {
  func.func @_fused_linear_l2norm_kernel(%arg0: i32, %arg1: memref<8x32xf32, #tpu.memory_space<vmem>>, %arg2: memref<32x32xf32, #tpu.memory_space<vmem>>, %arg3: memref<1x32xf32, #tpu.memory_space<vmem>>, %arg4: memref<8x32xf32, #tpu.memory_space<vmem>>) attributes {dimension_semantics = [#tpu.dimension_semantics<parallel>], iteration_bounds = array<i64: 1>, scalar_prefetch = 0 : i64, scratch_operands = 0 : i64, tpu.core_type = #tpu.core_type<tc>, window_params = [{transform_indices = @transform_0, window_bounds = array<i64: 8, 32>}, {pipeline_mode = #tpu.pipeline_mode<synchronous>, transform_indices = @transform_1, window_bounds = array<i64: 32, 32>}, {pipeline_mode = #tpu.pipeline_mode<synchronous>, transform_indices = @transform_2, window_bounds = array<i64: 1, 32>}, {transform_indices = @transform_3, window_bounds = array<i64: 8, 32>}]} {
    %c0 = arith.constant 0 : index
    %c0_0 = arith.constant 0 : index
    %0 = vector.load %arg1[%c0, %c0_0] : memref<8x32xf32, #tpu.memory_space<vmem>>, vector<8x32xf32>
    %c0_1 = arith.constant 0 : index
    %c0_2 = arith.constant 0 : index
    %1 = vector.load %arg2[%c0_1, %c0_2] : memref<32x32xf32, #tpu.memory_space<vmem>>, vector<32x32xf32>
    %cst = arith.constant dense<0.000000e+00> : vector<8x32xf32>
    %2 = tpu.matmul %0, %1, %cst {dimension_numbers = #tpu.dot_dimension_numbers<[1], [0], [0], [1], [0, 0, 1, 1], [], []>} : vector<8x32xf32>, vector<32x32xf32>, vector<8x32xf32> -> vector<8x32xf32>
    %c0_3 = arith.constant 0 : index
    %c0_4 = arith.constant 0 : index
    %3 = vector.load %arg3[%c0_3, %c0_4] : memref<1x32xf32, #tpu.memory_space<vmem>>, vector<1x32xf32>
    %4 = vector.broadcast %3 : vector<1x32xf32> to vector<8x32xf32>
    %5 = arith.addf %2, %4 : vector<8x32xf32>
    %6 = arith.mulf %5, %5 : vector<8x32xf32>
    %cst_5 = arith.constant dense<0.000000e+00> : vector<8xf32>
    %7 = vector.multi_reduction <add>, %6, %cst_5 [1] : vector<8x32xf32> to vector<8xf32>
    %8 = vector.shape_cast %7 : vector<8xf32> to vector<8x1xf32>
    %cst_6 = arith.constant 1.000000e-24 : f32
    %9 = vector.broadcast %cst_6 : f32 to vector<8x1xf32>
    %10 = arith.maximumf %8, %9 : vector<8x1xf32>
    %11 = math.rsqrt %10 : vector<8x1xf32>
    %12 = vector.broadcast %11 : vector<8x1xf32> to vector<8x32xf32>
    %13 = arith.mulf %5, %12 : vector<8x32xf32>
    %c0_7 = arith.constant 0 : index
    %c0_8 = arith.constant 0 : index
    %14 = vector.load %arg4[%c0_7, %c0_8] : memref<8x32xf32, #tpu.memory_space<vmem>>, vector<8x32xf32>
    tpu.vector_store %arg4[%c0_7, %c0_8], %13 {strides = array<i32>} : memref<8x32xf32, #tpu.memory_space<vmem>>, vector<8x32xf32>,
    return
  }
  func.func @transform_0(%arg0: i32) -> (i32, i32) {
    %c0_i32 = arith.constant 0 : i32
    %c0_i32_0 = arith.constant 0 : i32
    return %arg0, %c0_i32 : i32, i32
  }
  func.func @transform_1(%arg0: i32) -> (i32, i32) {
    %c0_i32 = arith.constant 0 : i32
    %c0_i32_0 = arith.constant 0 : i32
    %c0_i32_1 = arith.constant 0 : i32
    return %c0_i32, %c0_i32_0 : i32, i32
  }
  func.func @transform_2(%arg0: i32) -> (i32, i32) {
    %c0_i32 = arith.constant 0 : i32
    %c0_i32_0 = arith.constant 0 : i32
    %c0_i32_1 = arith.constant 0 : i32
    return %c0_i32, %c0_i32_0 : i32, i32
  }
  func.func @transform_3(%arg0: i32) -> (i32, i32) {
    %c0_i32 = arith.constant 0 : i32
    %c0_i32_0 = arith.constant 0 : i32
    return %arg0, %c0_i32 : i32, i32
  }
}

</mosaic_0001>

<llo_original>
// kernel: tpu_custom_call.1
$region0: #{tpu_custom_call.1}
  #allocation0 [shape = 'u32[]', space=smem, size = 0x4, offset = 0x4, fixed_abs, tag = 'smem constant byte address 0x4 - core index']
  #allocation1 [shape = 'u32[144,128]{1,0:T(1,128)}', space=vmem, size = 0x12000, scoped, tag = 'internal scratch']
  %s0 = inlined_call_operand.hbm [shape: f32[8,32], index: 0, kind: input, shape index: {}]
  %s1 = inlined_call_operand.hbm [shape: f32[32,32], index: 1, kind: input, shape index: {}]
  %s2 = inlined_call_operand.vmem [shape: f32[1,32], index: 2, kind: input, shape index: {}]
  %s3 = inlined_call_operand.hbm [shape: f32[8,32], index: 3, kind: output, shape index: {}]
  %s4 = sld [smem:[#allocation0]]
  $region30: #{tpu_custom_call.1} parent=0
    _
  %s6 = ssub.s32 1, %s4
  %s7 = scalar_select 0, %s6, %s4
  $region1: #{tpu_custom_call.1} parent=0
    #allocation2 [shape = 'u8[4096]{0}', space=vmem, size = 0x1000, scoped, tag = 'input window, operand 0, single buffered']
    #allocation3 [shape = 's32[1]{0}', space=sflag, size = 0x4, scoped, tag = 'scoped memory for tpu_custom_call.1']
    #allocation4 [shape = 's32[1]{0}', space=sflag, size = 0x4, scoped, tag = 'scoped memory for tpu_custom_call.1']
    #allocation5 [shape = 'u8[16384]{0}', space=vmem, size = 0x4000, scoped, tag = 'input window, operand 1, single buffered']
    #allocation6 [shape = 's32[1]{0}', space=sflag, size = 0x4, scoped, tag = 'scoped memory for tpu_custom_call.1']
    #allocation7 [shape = 'u8[4096]{0}', space=vmem, size = 0x1000, scoped, tag = 'output window, operand 0, single buffered']
    %8 = vsyncpa [#allocation3], 0
    %9 = vsyncpa [#allocation6], 0
    %10 = vsyncpa [#allocation4], 0
    // Predicated region
    $region2: #{tpu_custom_call.1} parent=1 // pred_check
      _
    $region3: #{tpu_custom_call.1} parent=1 // pred_check_branch
      %12 = sbr.rel (0) target = $region5
    $region4: #{tpu_custom_call.1} parent=1 // pred_region
      %s14 = ssub.s32 128, 128
      %15 = vsyncadd [#allocation3], %s14
      %s17 = sshll.u32 [#allocation2], 4
      %s18 = int_to_ptr.vmem [resolvable:$true] %s17
      %20 = dma.hbm_to_vmem [thread:$0]  %s0, 128, %s18, [#allocation3]
    $region5: #{tpu_custom_call.1} parent=1 // pred_fallthru
      _
    // Predicated region
    $region6: #{tpu_custom_call.1} parent=1 // pred_check
      _
    $region7: #{tpu_custom_call.1} parent=1 // pred_check_branch
      %22 = sbr.rel (0) target = $region9
    $region8: #{tpu_custom_call.1} parent=1 // pred_region
      %s24 = ssub.s32 512, 512
      %25 = vsyncadd [#allocation6], %s24
      %s26 = sshll.u32 [#allocation5], 4
      %s27 = int_to_ptr.vmem [resolvable:$true] %s26
      %32 = dma.hbm_to_vmem [thread:$0]  %s1, 512, %s27, [#allocation6], 128, 128, 8
    $region9: #{tpu_custom_call.1} parent=1 // pred_fallthru
      _
    // Predicated region
    $region10: #{tpu_custom_call.1} parent=1 // pred_check
      _
    $region11: #{tpu_custom_call.1} parent=1 // pred_check_branch
      %34 = sbr.rel (0) target = $region13
    $region12: #{tpu_custom_call.1} parent=1 // pred_region
      _
    $region13: #{tpu_custom_call.1} parent=1 // pred_fallthru
      _
    // Predicated region
    $region14: #{tpu_custom_call.1} parent=1 // pred_check
      _
    $region15: #{tpu_custom_call.1} parent=1 // pred_check_branch
      %36 = sbr.rel (0) target = $region17
    $region16: #{tpu_custom_call.1} parent=1 // pred_region
      %37 = dma.done [#allocation3], 128
    $region17: #{tpu_custom_call.1} parent=1 // pred_fallthru
      _
    // Predicated region
    $region18: #{tpu_custom_call.1} parent=1 // pred_check
      _
    $region19: #{tpu_custom_call.1} parent=1 // pred_check_branch
      %39 = sbr.rel (0) target = $region21
    $region20: #{tpu_custom_call.1} parent=1 // pred_region
      %40 = dma.done [#allocation6], 512
    $region21: #{tpu_custom_call.1} parent=1 // pred_fallthru
      _
    %v41 = vld [vmem:[#allocation2] sm:$0xff]
    %v42 = vld [vmem:[#allocation5] sm:$0xff]
    %v43 = vld [vmem:[#allocation5 + $0x8] sm:$0xff]
    %v44 = vld [vmem:[#allocation5 + $0x10] sm:$0xff]
    %v45 = vld [vmem:[#allocation5 + $0x18] sm:$0xff]
    %v46 = vld [vmem:[%s2] sm:$0x1]
    %v48 = vlaneseq
    %v49 = vshrl.u32 %v48, 7
    %v50 = vsub.s32 0, %v49
    %v51 = vrot.slane %v46, %v50
    %vm53 = vcmask 261120
    %v55 = vsel %vm53, %v41, 0
    %57 = vmatprep.subr.mxu0 0.0
    %58 = vmatpush1.msra.mxu0 0.0
    %59 = vmatprep.subr.mxu0 0.0
    %60 = vmatpush1.msra.mxu0 0.0
    %61 = vmatprep.subr.mxu0 0.0
    %62 = vmatpush1.msra.mxu0 0.0
    %63 = vmatprep.subr.mxu0 0.0
    %64 = vmatpush1.msra.mxu0 0.0
    %65 = vmatprep.subr.mxu0 0.0
    %66 = vmatpush1.msra.mxu0 0.0
    %67 = vmatprep.subr.mxu0 0.0
    %68 = vmatpush1.msra.mxu0 0.0
    %69 = vmatprep.subr.mxu0 0.0
    %70 = vmatpush1.msra.mxu0 0.0
    %71 = vmatprep.subr.mxu0 0.0
    %72 = vmatpush1.msra.mxu0 0.0
    %73 = vmatprep.subr.mxu0 0.0
    %74 = vmatpush1.msra.mxu0 0.0
    %75 = vmatprep.subr.mxu0 0.0
    %76 = vmatpush1.msra.mxu0 0.0
    %77 = vmatprep.subr.mxu0 0.0
    %78 = vmatpush1.msra.mxu0 0.0
    %79 = vmatprep.subr.mxu0 0.0
    %80 = vmatpush1.msra.mxu0 0.0
    %81 = vmatprep.subr.mxu0 0.0
    %82 = vmatpush1.msra.mxu0 %v45
    %83 = vmatprep.subr.mxu0 0.0
    %84 = vmatpush1.msra.mxu0 %v44
    %85 = vmatprep.subr.mxu0 0.0
    %86 = vmatpush1.msra.mxu0 %v43
    %87 = vmatprep.subr.mxu0 0.0
    %88 = vmatpush1.msra.mxu0 %v42
    %89 = vmatprep.subr.mxu0 0.0
    %90 = vmatpush2.msra.mxu0 0.0
    %91 = vmatprep.subr.mxu0 0.0
    %92 = vmatpush2.msra.mxu0 0.0
    %93 = vmatprep.subr.mxu0 0.0
    %94 = vmatpush2.msra.mxu0 0.0
    %95 = vmatprep.subr.mxu0 0.0
    %96 = vmatpush2.msra.mxu0 0.0
    %97 = vmatprep.subr.mxu0 0.0
    %98 = vmatpush2.msra.mxu0 0.0
    %99 = vmatprep.subr.mxu0 0.0
    %100 = vmatpush2.msra.mxu0 0.0
    %101 = vmatprep.subr.mxu0 0.0
    %102 = vmatpush2.msra.mxu0 0.0
    %103 = vmatprep.subr.mxu0 0.0
    %104 = vmatpush2.msra.mxu0 0.0
    %105 = vmatprep.subr.mxu0 0.0
    %106 = vmatpush2.msra.mxu0 0.0
    %107 = vmatprep.subr.mxu0 0.0
    %108 = vmatpush2.msra.mxu0 0.0
    %109 = vmatprep.subr.mxu0 0.0
    %110 = vmatpush2.msra.mxu0 0.0
    %111 = vmatprep.subr.mxu0 0.0
    %112 = vmatpush2.msra.mxu0 0.0
    %113 = vmatprep.subr.mxu0 0.0
    %114 = vmatpush2.msra.mxu0 0.0
    %115 = vmatprep.subr.mxu0 0.0
    %116 = vmatpush2.msra.mxu0 0.0
    %117 = vmatprep.subr.mxu0 0.0
    %118 = vmatpush2.msra.mxu0 0.0
    %119 = vmatprep.subr.mxu0 0.0
    %120 = vmatpush2.msra.mxu0 0.0
    %121 = vmatprep.mubr.f32.mxu0 0.0
    %122 = vmatmul.mubr.f32.gmra.mxu0 %v55
    %v123 = vpop.f32.mrf.mxu0
    %v124 = vadd.f32 %v51, %v123
    %v125 = vpop.f32.mrf.mxu0
    %126 = vdwg.mxu0
    %v127 = vmul.f32 %v124, %v124
    %v128 = vsel %vm53, %v127, 0.0
    %129 = vadd.xlane.f32.xlu0 %v128
    %v130 = vpop.xlane.xlu0 %129
    %v131 = vmax.f32 %v130, 1e-24
    %v132 = vrsqrt.pop %v131
    %v133 = vmul.f32 %v124, %v132
    %134 = vst.msk [vmem:[#allocation7] sm:$0xff] %vm53, %v133
    // Predicated region
    $region22: #{tpu_custom_call.1} parent=1 // pred_check
      _
    $region23: #{tpu_custom_call.1} parent=1 // pred_check_branch
      %136 = sbr.rel (0) target = $region25
    $region24: #{tpu_custom_call.1} parent=1 // pred_region
      %s138 = ssub.s32 128, 128
      %139 = vsyncadd [#allocation4], %s138
      %s141 = sshll.u32 [#allocation7], 4
      %s142 = int_to_ptr.vmem [resolvable:$true] %s141
      %144 = dma.vmem_to_hbm [thread:$0]  %s142, 128, %s3, [#allocation4]
    $region25: #{tpu_custom_call.1} parent=1 // pred_fallthru
      _
    // Predicated region
    $region26: #{tpu_custom_call.1} parent=1 // pred_check
      _
    $region27: #{tpu_custom_call.1} parent=1 // pred_check_branch
      %146 = sbr.rel (0) target = $region29
    $region28: #{tpu_custom_call.1} parent=1 // pred_region
      %147 = dma.done [#allocation4], 128
    $region29: #{tpu_custom_call.1} parent=1 // pred_fallthru
      _
    %148 = vsyncpa [#allocation3], 1
    %149 = vsyncpa [#allocation6], 1
    %150 = vsyncpa [#allocation4], 1

</llo_original>
